<compile_context>
chip_gen: v5e
topology: v5e:2x2
jax: 0.10.0
libtpu: 0.0.40
codegen_flags: <defaults>
</compile_context>

<pallas_src>
import jax
import jax.numpy as jnp
from jax import lax
from jax.experimental import pallas as pl
from jax.experimental.pallas import tpu as pltpu

LANES = 128
SUB = 8
MAX_BLOCK_ROWS = 8192   # (8192, 128) f32 = 4 MiB per input tile
CHUNK_ROWS = 128        # inner-loop sub-chunk: (128, 128) f32 = 16 vregs per temp


def dice_bce_loss(logits, targets, smooth=1.0, bce_weight=0.5):
    """JAX/Pallas equivalent of DiceBCELoss.forward(inputs=logits, targets).

    Accepts any shape/dtype (bf16 targets/logits fine: kernel upcasts per
    chunk).  Deviates from torch only in F.binary_cross_entropy's -100 log
    clamp for saturated sigmoids (|logit| > ~100).
    """
    n = logits.size
    x = logits.reshape(-1)
    t = targets.reshape(-1)

    # Copy-free fast path: view the flat stream as (rows, 128).  Only when the
    # element count is not a multiple of 128 (or is tiny) do we pay a pad copy.
    min_elems = SUB * LANES
    if n % LANES != 0 or n < min_elems:
        padded = int(pl.cdiv(n, min_elems)) * min_elems
        # Pad logits with -100 / targets with 0: contributes (numerically)
        # nothing to any of the four sums (exp(-100) ~ 4e-44).
        x = jnp.pad(x, (0, padded - n), constant_values=-100.0)
        t = jnp.pad(t, (0, padded - n), constant_values=0)
    rows = x.size // LANES
    x = x.reshape(rows, LANES)
    t = t.reshape(rows, LANES)

    # Tile sizing: biggest block that fits comfortably in VMEM, a multiple of
    # the inner chunk so the in-kernel loop is rectangular.
    if rows >= MAX_BLOCK_ROWS:
        block_rows = MAX_BLOCK_ROWS
    elif rows >= CHUNK_ROWS:
        block_rows = (rows // CHUNK_ROWS) * CHUNK_ROWS
    else:
        block_rows = (rows // SUB) * SUB
    chunk = min(CHUNK_ROWS, block_rows)
    n_chunks = block_rows // chunk

    num_blocks = int(pl.cdiv(rows, block_rows))
    # Size-2 "parallel" axis: 2-TC chips (v7x/megacore) split the stream; on
    # single-TC chips it just runs sequentially (no padding cost any more).
    # TODO: switch to pltpu.CORE_PARALLEL if xprof shows "parallel" not
    # sharding across v7x's two TensorCores.
    num_splits = 2 if num_blocks >= 2 else 1
    steps = int(pl.cdiv(num_blocks, num_splits))
    needs_mask = (num_splits * steps * block_rows) != rows

    def index_map(c, i):
        # Clamp so logical blocks past the end re-read the last real block
        # (their contribution is masked to zero inside the kernel).
        return (jnp.minimum(c * steps + i, num_blocks - 1), 0)

    def _kernel(x_ref, t_ref, acc_ref):
        i = pl.program_id(1)

        @pl.when(i == 0)
        def _():
            acc_ref[...] = jnp.zeros_like(acc_ref)

        # Logical (unclamped) first row of this block, for tail masking.
        row_base = (pl.program_id(0) * steps + i) * block_rows

        def run(masked):
            if masked:
                iota_r = lax.broadcasted_iota(jnp.int32, (chunk, LANES), 0)

            def body(ci, carry):
                a_pt, a_p, a_t, a_b = carry
                r0 = pl.multiple_of(ci * chunk, chunk)
                xv = x_ref[pl.ds(r0, chunk), :].astype(jnp.float32)
                tv = t_ref[pl.ds(r0, chunk), :].astype(jnp.float32)
                if masked:
                    valid = (row_base + ci * chunk + iota_r) < rows
                    xv = jnp.where(valid, xv, -100.0)
                    tv = jnp.where(valid, tv, 0.0)
                # Stable logit-space math, 2 transcendentals / element:
                #   e = exp(-|x|), softplus s = max(x,0) + log1p(e)
                #   sigmoid p = 1/(1+e) (x>=0) or e/(1+e) (x<0)
                #   bce = s - x*t == -(t*log p + (1-t)*log(1-p))
                e = jnp.exp(-jnp.abs(xv))
                s = jnp.maximum(xv, 0.0) + jnp.log1p(e)
                d = 1.0 + e
                inv = pl.reciprocal(d, approx=True)
                inv = inv * (2.0 - d * inv)        # one Newton step -> ~f32 exact
                p = jnp.where(xv >= 0.0, inv, e * inv)
                bce = s - xv * tv
                pt = p * tv

                def fold(v):                       # (chunk,128) -> (8,128), VPU only
                    return v.reshape(chunk // SUB, SUB, LANES).sum(axis=0)

                return (a_pt + fold(pt), a_p + fold(p),
                        a_t + fold(tv), a_b + fold(bce))

            zero = jnp.zeros((SUB, LANES), jnp.float32)
            a_pt, a_p, a_t, a_b = lax.fori_loop(
                0, n_chunks, body, (zero, zero, zero, zero))
            acc_ref[0] += a_pt   # intersection partials
            acc_ref[1] += a_p    # sum(sigmoid(x)) partials
            acc_ref[2] += a_t    # sum(targets) partials
            acc_ref[3] += a_b    # BCE-sum partials

        if needs_mask:
            is_full = row_base + block_rows <= rows

            @pl.when(is_full)
            def _():
                run(False)

            @pl.when(jnp.logical_not(is_full))
            def _():
                run(True)
        else:
            run(False)

    partials = pl.pallas_call(
        _kernel,
        out_shape=jax.ShapeDtypeStruct((num_splits * 4, SUB, LANES), jnp.float32),
        grid=(num_splits, steps),
        in_specs=[
            pl.BlockSpec((block_rows, LANES), index_map),
            pl.BlockSpec((block_rows, LANES), index_map),
        ],
        out_specs=pl.BlockSpec((4, SUB, LANES), lambda c, i: (c, 0, 0)),
        compiler_params=pltpu.CompilerParams(
            dimension_semantics=("parallel", "arbitrary"),
            vmem_limit_bytes=40 << 20),
    )(x, t)

    # Tiny epilogue in plain JAX: cross-lane/sublane/core reduction + scalars.
    sums = partials.reshape(num_splits, 4, SUB, LANES).sum(axis=(0, 2, 3))
    intersection = sums[0]
    inputs_sum = sums[1]
    targets_sum = sums[2]
    bce = sums[3] / n  # mean reduction over the original element count

    dice_loss = 1.0 - (2.0 * intersection + smooth) / (
        inputs_sum + targets_sum + smooth)
    return bce * bce_weight + dice_loss * (1.0 - bce_weight)


if __name__ == "__main__":
    # DiceBCELoss has no learnable parameters (weight/size_average unused).
    key = jax.random.PRNGKey(0)
    k1, k2 = jax.random.split(key)

    shape = (2, 4, 16, 16)  # NCHW, small synthetic logits + binary mask
    logits = jax.random.normal(k1, shape, dtype=jnp.float32)
    targets = (jax.random.uniform(k2, shape) > 0.5).astype(jnp.float32)

    loss = jax.jit(dice_bce_loss)(logits, targets)
    jax.block_until_ready(loss)

    # Pure-JAX reference check (same math, no kernel).  Tolerance leaves
    # headroom for the approximate-reciprocal (+ Newton step) sigmoid path.
    p = jax.nn.sigmoid(logits).reshape(-1)
    t = targets.reshape(-1)
    inter = jnp.sum(p * t)
    dice_ref = 1.0 - (2.0 * inter + 1.0) / (jnp.sum(p) + jnp.sum(t) + 1.0)
    bce_ref = jnp.mean(-(t * jnp.log(p) + (1.0 - t) * jnp.log(1.0 - p)))
    ref = 0.5 * bce_ref + 0.5 * dice_ref
    assert jnp.allclose(loss, ref, atol=2e-5, rtol=2e-4), (loss, ref)

    print("KERNEL_OK")
</pallas_src>

<mosaic_0001>
module attributes {stable_mosaic.version = 11 : i64} {
  func.func @_kernel(%arg0: i32, %arg1: i32, %arg2: memref<16x128xf32, #tpu.memory_space<vmem>>, %arg3: memref<16x128xf32, #tpu.memory_space<vmem>>, %arg4: memref<4x8x128xf32, #tpu.memory_space<vmem>>) attributes {dimension_semantics = [#tpu.dimension_semantics<parallel>, #tpu.dimension_semantics<arbitrary>], iteration_bounds = array<i64: 1, 1>, scalar_prefetch = 0 : i64, scratch_operands = 0 : i64, tpu.core_type = #tpu.core_type<tc>, window_params = [{transform_indices = @transform_0, window_bounds = array<i64: 16, 128>}, {transform_indices = @transform_1, window_bounds = array<i64: 16, 128>}, {transform_indices = @transform_2, window_bounds = array<i64: 4, 8, 128>}]} {
    %c0_i32 = arith.constant 0 : i32
    %0 = arith.cmpi eq, %arg1, %c0_i32 : i32
    %1 = arith.extui %0 : i1 to i32
    %c0_i32_0 = arith.constant 0 : i32
    %2 = arith.cmpi ne, %1, %c0_i32_0 : i32
    scf.if %2 {
      %cst_33 = arith.constant 0.000000e+00 : f32
      %68 = vector.broadcast %cst_33 : f32 to vector<4x8x128xf32>
      %c0_34 = arith.constant 0 : index
      %c0_35 = arith.constant 0 : index
      %c0_36 = arith.constant 0 : index
      %69 = vector.load %arg4[%c0_34, %c0_35, %c0_36] : memref<4x8x128xf32, #tpu.memory_space<vmem>>, vector<4x8x128xf32>
      tpu.vector_store %arg4[%c0_34, %c0_35, %c0_36], %68 {strides = array<i32>} : memref<4x8x128xf32, #tpu.memory_space<vmem>>, vector<4x8x128xf32>,
    } else {
    }
    %cst = arith.constant 0.000000e+00 : f32
    %3 = vector.broadcast %cst : f32 to vector<8x128xf32>
    %c0_i32_1 = arith.constant 0 : i32
    %c16_i32 = arith.constant 16 : i32
    %4 = arith.muli %c0_i32_1, %c16_i32 : i32
    %5 = tpu.assume_multiple %4, 16 : i32
    %6 = arith.index_cast %5 : i32 to index
    %c0 = arith.constant 0 : index
    %7 = vector.load %arg2[%6, %c0] : memref<16x128xf32, #tpu.memory_space<vmem>>, vector<16x128xf32>
    %8 = arith.index_cast %5 : i32 to index
    %c0_2 = arith.constant 0 : index
    %9 = vector.load %arg3[%8, %c0_2] : memref<16x128xf32, #tpu.memory_space<vmem>>, vector<16x128xf32>
    %10 = math.absf %7 : vector<16x128xf32>
    %cst_3 = arith.constant 0.000000e+00 : f32
    %11 = vector.broadcast %cst_3 : f32 to vector<16x128xf32>
    %12 = arith.subf %11, %10 : vector<16x128xf32>
    %13 = math.exp %12 : vector<16x128xf32>
    %cst_4 = arith.constant 0.000000e+00 : f32
    %14 = vector.broadcast %cst_4 : f32 to vector<16x128xf32>
    %15 = arith.maximumf %7, %14 : vector<16x128xf32>
    %16 = math.log1p %13 : vector<16x128xf32>
    %17 = arith.addf %15, %16 : vector<16x128xf32>
    %cst_5 = arith.constant 1.000000e+00 : f32
    %18 = vector.broadcast %cst_5 : f32 to vector<16x128xf32>
    %19 = arith.addf %18, %13 : vector<16x128xf32>
    %20 = tpu.reciprocal %19 {approx = true} : vector<16x128xf32> -> vector<16x128xf32>
    %21 = arith.mulf %19, %20 : vector<16x128xf32>
    %cst_6 = arith.constant 2.000000e+00 : f32
    %22 = vector.broadcast %cst_6 : f32 to vector<16x128xf32>
    %23 = arith.subf %22, %21 : vector<16x128xf32>
    %24 = arith.mulf %20, %23 : vector<16x128xf32>
    %cst_7 = arith.constant 0.000000e+00 : f32
    %25 = vector.broadcast %cst_7 : f32 to vector<16x128xf32>
    %26 = arith.cmpf oge, %7, %25 : vector<16x128xf32>
    %27 = arith.mulf %13, %24 : vector<16x128xf32>
    %28 = arith.select %26, %24, %27 : vector<16x128xi1>, vector<16x128xf32>
    %29 = arith.mulf %7, %9 : vector<16x128xf32>
    %30 = arith.subf %17, %29 : vector<16x128xf32>
    %31 = arith.mulf %28, %9 : vector<16x128xf32>
    %32 = vector.shape_cast %31 : vector<16x128xf32> to vector<2x8x128xf32>
    %cst_8 = arith.constant dense<0.000000e+00> : vector<8x128xf32>
    %33 = vector.multi_reduction <add>, %32, %cst_8 [0] : vector<2x8x128xf32> to vector<8x128xf32>
    %34 = arith.addf %3, %33 : vector<8x128xf32>
    %35 = vector.shape_cast %28 : vector<16x128xf32> to vector<2x8x128xf32>
    %cst_9 = arith.constant dense<0.000000e+00> : vector<8x128xf32>
    %36 = vector.multi_reduction <add>, %35, %cst_9 [0] : vector<2x8x128xf32> to vector<8x128xf32>
    %37 = arith.addf %3, %36 : vector<8x128xf32>
    %38 = vector.shape_cast %9 : vector<16x128xf32> to vector<2x8x128xf32>
    %cst_10 = arith.constant dense<0.000000e+00> : vector<8x128xf32>
    %39 = vector.multi_reduction <add>, %38, %cst_10 [0] : vector<2x8x128xf32> to vector<8x128xf32>
    %40 = arith.addf %3, %39 : vector<8x128xf32>
    %41 = vector.shape_cast %30 : vector<16x128xf32> to vector<2x8x128xf32>
    %cst_11 = arith.constant dense<0.000000e+00> : vector<8x128xf32>
    %42 = vector.multi_reduction <add>, %41, %cst_11 [0] : vector<2x8x128xf32> to vector<8x128xf32>
    %43 = arith.addf %3, %42 : vector<8x128xf32>
    %c1_i32 = arith.constant 1 : i32
    %c0_12 = arith.constant 0 : index
    %c0_13 = arith.constant 0 : index
    %c0_14 = arith.constant 0 : index
    %44 = vector.load %arg4[%c0_12, %c0_13, %c0_14] : memref<4x8x128xf32, #tpu.memory_space<vmem>>, vector<1x8x128xf32>
    %45 = vector.shape_cast %44 : vector<1x8x128xf32> to vector<8x128xf32>
    %46 = arith.addf %45, %34 : vector<8x128xf32>
    %c0_15 = arith.constant 0 : index
    %c0_16 = arith.constant 0 : index
    %c0_17 = arith.constant 0 : index
    %47 = vector.load %arg4[%c0_15, %c0_16, %c0_17] : memref<4x8x128xf32, #tpu.memory_space<vmem>>, vector<1x8x128xf32>
    %48 = vector.shape_cast %47 : vector<1x8x128xf32> to vector<8x128xf32>
    %49 = vector.shape_cast %46 : vector<8x128xf32> to vector<1x8x128xf32>
    tpu.vector_store %arg4[%c0_15, %c0_16, %c0_17], %49 {strides = array<i32>} : memref<4x8x128xf32, #tpu.memory_space<vmem>>, vector<1x8x128xf32>,
    %c1 = arith.constant 1 : index
    %c0_18 = arith.constant 0 : index
    %c0_19 = arith.constant 0 : index
    %50 = vector.load %arg4[%c1, %c0_18, %c0_19] : memref<4x8x128xf32, #tpu.memory_space<vmem>>, vector<1x8x128xf32>
    %51 = vector.shape_cast %50 : vector<1x8x128xf32> to vector<8x128xf32>
    %52 = arith.addf %51, %37 : vector<8x128xf32>
    %c1_20 = arith.constant 1 : index
    %c0_21 = arith.constant 0 : index
    %c0_22 = arith.constant 0 : index
    %53 = vector.load %arg4[%c1_20, %c0_21, %c0_22] : memref<4x8x128xf32, #tpu.memory_space<vmem>>, vector<1x8x128xf32>
    %54 = vector.shape_cast %53 : vector<1x8x128xf32> to vector<8x128xf32>
    %55 = vector.shape_cast %52 : vector<8x128xf32> to vector<1x8x128xf32>
    tpu.vector_store %arg4[%c1_20, %c0_21, %c0_22], %55 {strides = array<i32>} : memref<4x8x128xf32, #tpu.memory_space<vmem>>, vector<1x8x128xf32>,
    %c2 = arith.constant 2 : index
    %c0_23 = arith.constant 0 : index
    %c0_24 = arith.constant 0 : index
    %56 = vector.load %arg4[%c2, %c0_23, %c0_24] : memref<4x8x128xf32, #tpu.memory_space<vmem>>, vector<1x8x128xf32>
    %57 = vector.shape_cast %56 : vector<1x8x128xf32> to vector<8x128xf32>
    %58 = arith.addf %57, %40 : vector<8x128xf32>
    %c2_25 = arith.constant 2 : index
    %c0_26 = arith.constant 0 : index
    %c0_27 = arith.constant 0 : index
    %59 = vector.load %arg4[%c2_25, %c0_26, %c0_27] : memref<4x8x128xf32, #tpu.memory_space<vmem>>, vector<1x8x128xf32>
    %60 = vector.shape_cast %59 : vector<1x8x128xf32> to vector<8x128xf32>
    %61 = vector.shape_cast %58 : vector<8x128xf32> to vector<1x8x128xf32>
    tpu.vector_store %arg4[%c2_25, %c0_26, %c0_27], %61 {strides = array<i32>} : memref<4x8x128xf32, #tpu.memory_space<vmem>>, vector<1x8x128xf32>,
    %c3 = arith.constant 3 : index
    %c0_28 = arith.constant 0 : index
    %c0_29 = arith.constant 0 : index
    %62 = vector.load %arg4[%c3, %c0_28, %c0_29] : memref<4x8x128xf32, #tpu.memory_space<vmem>>, vector<1x8x128xf32>
    %63 = vector.shape_cast %62 : vector<1x8x128xf32> to vector<8x128xf32>
    %64 = arith.addf %63, %43 : vector<8x128xf32>
    %c3_30 = arith.constant 3 : index
    %c0_31 = arith.constant 0 : index
    %c0_32 = arith.constant 0 : index
    %65 = vector.load %arg4[%c3_30, %c0_31, %c0_32] : memref<4x8x128xf32, #tpu.memory_space<vmem>>, vector<1x8x128xf32>
    %66 = vector.shape_cast %65 : vector<1x8x128xf32> to vector<8x128xf32>
    %67 = vector.shape_cast %64 : vector<8x128xf32> to vector<1x8x128xf32>
    tpu.vector_store %arg4[%c3_30, %c0_31, %c0_32], %67 {strides = array<i32>} : memref<4x8x128xf32, #tpu.memory_space<vmem>>, vector<1x8x128xf32>,
    return
  }
  func.func @transform_0(%arg0: i32, %arg1: i32) -> (i32, i32) {
    %c1_i32 = arith.constant 1 : i32
    %0 = arith.muli %arg0, %c1_i32 : i32
    %1 = arith.addi %0, %arg1 : i32
    %c0_i32 = arith.constant 0 : i32
    %2 = arith.minsi %1, %c0_i32 : i32
    %c0_i32_0 = arith.constant 0 : i32
    %c0_i32_1 = arith.constant 0 : i32
    return %2, %c0_i32_0 : i32, i32
  }
  func.func @transform_1(%arg0: i32, %arg1: i32) -> (i32, i32) {
    %c1_i32 = arith.constant 1 : i32
    %0 = arith.muli %arg0, %c1_i32 : i32
    %1 = arith.addi %0, %arg1 : i32
    %c0_i32 = arith.constant 0 : i32
    %2 = arith.minsi %1, %c0_i32 : i32
    %c0_i32_0 = arith.constant 0 : i32
    %c0_i32_1 = arith.constant 0 : i32
    return %2, %c0_i32_0 : i32, i32
  }
  func.func @transform_2(%arg0: i32, %arg1: i32) -> (i32, i32, i32) {
    %c0_i32 = arith.constant 0 : i32
    %c0_i32_0 = arith.constant 0 : i32
    %c0_i32_1 = arith.constant 0 : i32
    return %arg0, %c0_i32, %c0_i32_0 : i32, i32, i32
  }
}

</mosaic_0001>

<llo_original>
// kernel: dice_bce_loss.1
$region0: #{dice_bce_loss.1}
  #allocation0 [shape = 'u32[]', space=smem, size = 0x4, offset = 0x4, fixed_abs, tag = 'smem constant byte address 0x4 - core index']
  #allocation1 [shape = 'u32[72,128]{1,0:T(1,128)}', space=vmem, size = 0x9000, scoped, tag = 'internal scratch']
  %s0 = inlined_call_operand.vmem [shape: f32[16,128], index: 0, kind: input, shape index: {}]
  %s1 = inlined_call_operand.vmem [shape: f32[16,128], index: 1, kind: input, shape index: {}]
  %s2 = inlined_call_operand.vmem [shape: f32[4,8,128], index: 2, kind: output, shape index: {}]
  %s3 = sld [smem:[#allocation0]]
  $region22: #{dice_bce_loss.1} parent=0
    _
  %s5 = ssub.s32 1, %s3
  %s6 = scalar_select 0, %s5, %s3
  // Predicated region
  $region2: #{dice_bce_loss.1} parent=0 // pred_check
    _
  $region3: #{dice_bce_loss.1} parent=0 // pred_check_branch
    %8 = sbr.rel (0) target = $region5
  $region4: #{dice_bce_loss.1} parent=0 // pred_region
    %s9 = sadd.s32 0, 0
    %p10 = scmp.lt.s32.totalorder %s9, 0
    %s11 = scalar_select %p10, %s9, 0
    %s12 = smul.u32 2, %s11
    %p13 = scmp.lt.s32.totalorder %s12, 1
    %s14 = scalar_select %p13, %s12, 1
    %s15 = smul.addr %s14, 8
    %s16 = scalar_lea.vmem %s0, %s15
    %s17 = sadd.s32 0, 0
    %p18 = scmp.lt.s32.totalorder %s17, 0
    %s19 = scalar_select %p18, %s17, 0
    %s20 = smul.u32 2, %s19
  $region5: #{dice_bce_loss.1} parent=0 // pred_fallthru
    _
  // Predicated region
  $region6: #{dice_bce_loss.1} parent=0 // pred_check
    _
  $region7: #{dice_bce_loss.1} parent=0 // pred_check_branch
    %22 = sbr.rel (0) target = $region9
  $region8: #{dice_bce_loss.1} parent=0 // pred_region
    %s23 = sadd.s32 0, 0
    %p24 = scmp.lt.s32.totalorder %s23, 0
    %s25 = scalar_select %p24, %s23, 0
    %s26 = smul.u32 2, %s25
    %p27 = scmp.lt.s32.totalorder %s26, 1
    %s28 = scalar_select %p27, %s26, 1
    %s29 = smul.addr %s28, 8
    %s30 = scalar_lea.vmem %s1, %s29
    %s31 = sadd.s32 0, 0
    %p32 = scmp.lt.s32.totalorder %s31, 0
    %s33 = scalar_select %p32, %s31, 0
    %s34 = smul.u32 2, %s33
  $region9: #{dice_bce_loss.1} parent=0 // pred_fallthru
    _
  %s35 = sadd.s32 0, 0
  %p36 = scmp.lt.s32.totalorder %s35, 0
  %s37 = scalar_select %p36, %s35, 0
  %s38 = smul.u32 2, %s37
  %p39 = scmp.lt.s32.totalorder %s38, 1
  %s40 = scalar_select %p39, %s38, 1
  %s41 = smul.addr %s40, 8
  %s42 = scalar_lea.vmem %s0, %s41
  %s43 = sadd.s32 0, 0
  %p44 = scmp.lt.s32.totalorder %s43, 0
  %s45 = scalar_select %p44, %s43, 0
  %s46 = smul.u32 2, %s45
  %p47 = scmp.lt.s32.totalorder %s46, 1
  %s48 = scalar_select %p47, %s46, 1
  %s49 = smul.addr %s48, 8
  %s50 = scalar_lea.vmem %s1, %s49
  %s51 = sadd.s32 0, 0
  %p52 = scmp.lt.s32.totalorder %s51, 0
  %s53 = scalar_select %p52, %s51, 0
  %s54 = smul.u32 2, %s53
  %p55 = scmp.lt.s32.totalorder %s54, 1
  %s56 = scalar_select %p55, %s54, 1
  %s57 = smul.addr %s56, 8
  %s58 = scalar_lea.vmem %s0, %s57
  %s59 = sadd.s32 0, 0
  %p60 = scmp.lt.s32.totalorder %s59, 0
  %s61 = scalar_select %p60, %s59, 0
  %s62 = smul.u32 2, %s61
  %s63 = sadd.s32 0, 0
  %p64 = scmp.lt.s32.totalorder %s63, 0
  %s65 = scalar_select %p64, %s63, 0
  %s66 = smul.u32 2, %s65
  %p67 = scmp.lt.s32.totalorder %s66, 1
  %s68 = scalar_select %p67, %s66, 1
  %s69 = smul.addr %s68, 8
  %s70 = scalar_lea.vmem %s1, %s69
  %s71 = sadd.s32 0, 0
  %p72 = scmp.lt.s32.totalorder %s71, 0
  %s73 = scalar_select %p72, %s71, 0
  %s74 = smul.u32 2, %s73
  %p75 = scmp.eq.s32.totalorder 0, 0
  // Predicated region
  $region10: #{dice_bce_loss.1} parent=0 // pred_check
    %p76 = pneg %p75
  $region11: #{dice_bce_loss.1} parent=0 // pred_check_branch
    %78 = sbr.rel (%p76) target = $region13
  $region12: #{dice_bce_loss.1} parent=0 // pred_region
    %79 = vst [vmem:[%s2] sm:$0xff] 0.0
    %80 = vst [vmem:[%s2 + $0x8] sm:$0xff] 0.0
    %81 = vst [vmem:[%s2 + $0x10] sm:$0xff] 0.0
    %82 = vst [vmem:[%s2 + $0x18] sm:$0xff] 0.0
  $region13: #{dice_bce_loss.1} parent=0 // pred_fallthru
    _
  %v83 = vld [vmem:[%s58] sm:$0xff]
  %v84 = vld [vmem:[%s58 + $0x8] sm:$0xff]
  %v85 = vld [vmem:[%s70] sm:$0xff]
  %v86 = vld [vmem:[%s70 + $0x8] sm:$0xff]
  %v87 = vand.u32 2147483647, %v83
  %v88 = vand.u32 2147483647, %v84
  %v89 = vsub.f32 0.0, %v87
  %v90 = vsub.f32 0.0, %v88
  %v91 = vmul.f32 %v89, 1.442695
  %v92 = vpow.pop %v91
  %v93 = vmul.f32 %v90, 1.442695
  %v94 = vpow.pop %v93
  %v95 = vmax.f32 %v83, 0.0
  %v96 = vmax.f32 %v84, 0.0
  %v97 = vadd.f32 %v92, 1.0
  %v98 = vlog2.pop %v97
  %v99 = vmul.f32 %v98, 0.6931472
  %v100 = vmul.f32 -0.5, %v92
  %v101 = vadd.f32 %v100, 1.0
  %v102 = vmul.f32 %v101, %v92
  %v103 = vand.u32 2147483647, %v92
  %vm104 = vcmp.lt.f32.partialorder %v103, 0.0004427343
  %v105 = vsel %vm104, %v102, %v99
  %v106 = vadd.f32 %v94, 1.0
  %v107 = vlog2.pop %v106
  %v108 = vmul.f32 %v107, 0.6931472
  %v109 = vmul.f32 -0.5, %v94
  %v110 = vadd.f32 %v109, 1.0
  %v111 = vmul.f32 %v110, %v94
  %v112 = vand.u32 2147483647, %v94
  %vm113 = vcmp.lt.f32.partialorder %v112, 0.0004427343
  %v114 = vsel %vm113, %v111, %v108
  %v115 = vadd.f32 %v95, %v105
  %v116 = vadd.f32 %v96, %v114
  %v117 = vadd.f32 %v92, 1.0
  %v118 = vadd.f32 %v94, 1.0
  %v119 = vrcp.pop %v117
  %v120 = vrcp.pop %v118
  %v121 = vmul.f32 %v117, %v119
  %v122 = vmul.f32 %v118, %v120
  %v123 = vsub.f32 2.0, %v121
  %v124 = vsub.f32 2.0, %v122
  %v125 = vmul.f32 %v119, %v123
  %v126 = vmul.f32 %v120, %v124
  %vm127 = vcmp.ge.f32.partialorder %v83, 0.0
  %vm128 = vcmp.ge.f32.partialorder %v84, 0.0
  %v129 = vmul.f32 %v92, %v125
  %v130 = vmul.f32 %v94, %v126
  %v131 = vsel %vm127, %v125, %v129
  %v132 = vsel %vm128, %v126, %v130
  %v133 = vmul.f32 %v83, %v85
  %v134 = vmul.f32 %v84, %v86
  %v135 = vsub.f32 %v115, %v133
  %v136 = vsub.f32 %v116, %v134
  %v137 = vmul.f32 %v131, %v85
  %v138 = vmul.f32 %v132, %v86
  %v139 = vadd.f32 %v137, %v138
  %v140 = vadd.f32 %v139, 0.0
  %v141 = vadd.f32 %v131, %v132
  %v142 = vadd.f32 %v141, 0.0
  %v143 = vadd.f32 %v85, %v86
  %v144 = vadd.f32 %v143, 0.0
  %v145 = vadd.f32 %v135, %v136
  %v146 = vadd.f32 %v145, 0.0
  %v147 = vld [vmem:[%s2] sm:$0xff]
  %v148 = vadd.f32 %v147, %v140
  %149 = vst [vmem:[%s2] sm:$0xff] %v148
  %s150 = scalar_lea.vmem %s2, 8
  %v151 = vld [vmem:[%s150] sm:$0xff]
  %v152 = vadd.f32 %v151, %v142
  %153 = vst [vmem:[%s150] sm:$0xff] %v152
  %s154 = scalar_lea.vmem %s2, 16
  %v155 = vld [vmem:[%s154] sm:$0xff]
  %v156 = vadd.f32 %v155, %v144
  %157 = vst [vmem:[%s154] sm:$0xff] %v156
  %s158 = scalar_lea.vmem %s2, 24
  %v159 = vld [vmem:[%s158] sm:$0xff]
  %v160 = vadd.f32 %v159, %v146
  %161 = vst [vmem:[%s158] sm:$0xff] %v160
  // Predicated region
  $region14: #{dice_bce_loss.1} parent=0 // pred_check
    _
  $region15: #{dice_bce_loss.1} parent=0 // pred_check_branch
    %163 = sbr.rel (0) target = $region17
  $region16: #{dice_bce_loss.1} parent=0 // pred_region
    _
  $region17: #{dice_bce_loss.1} parent=0 // pred_fallthru
    _
  // Predicated region
  $region18: #{dice_bce_loss.1} parent=0 // pred_check
    _
  $region19: #{dice_bce_loss.1} parent=0 // pred_check_branch
    %165 = sbr.rel (0) target = $region21
  $region20: #{dice_bce_loss.1} parent=0 // pred_region
    _
  $region21: #{dice_bce_loss.1} parent=0 // pred_fallthru
    _

</llo_original>
